<compile_context>
chip_gen: v7x
topology: tpu7x:2x2x1
jax: 0.10.0
libtpu: 0.0.40
codegen_flags: <defaults>
</compile_context>

<pallas_src>
import functools
import math

import jax
import jax.numpy as jnp
import numpy as np
from jax.experimental import pallas as pl
from jax.experimental.pallas import tpu as pltpu


_LEAKY_SLOPE = 0.2
_MAX_ROW_TILE = 1024                   # sublane-direction tile cap
_MAX_COL_TILE = 4096                   # lane-direction tile cap (multiple of 128)
_MAX_BLOCK_BYTES = 8 * 1024 * 1024     # ~8 MiB blocks amortize per-step overhead (v7x)
_VMEM_LIMIT_BYTES = 48 * 1024 * 1024   # 4 x 8 MiB double-buffered blocks + slack (< 64 MiB)


def _sublane_multiple(dtype):
    """Sublane rounding: packed dtypes pack 2 (bf16) / 4 (int8, fp8) rows per sublane."""
    itemsize = jnp.dtype(dtype).itemsize
    return 8 * max(1, 4 // max(1, itemsize))


def _col_tile(cols):
    # Full-array-dimension exemption: a block equal to the full dim is always
    # legal and keeps stores lane-dense (no masked vst.msk edge column).
    if cols <= _MAX_COL_TILE:
        return cols
    return _MAX_COL_TILE               # multiple of 128; partial edge only if needed


def _row_tile(rows, col_tile, dtype):
    sub = _sublane_multiple(dtype)
    itemsize = jnp.dtype(dtype).itemsize
    by_bytes = _MAX_BLOCK_BYTES // max(1, col_tile * itemsize)
    cap = min(_MAX_ROW_TILE, max(sub, (by_bytes // sub) * sub))
    if rows <= cap:
        return rows                    # full-dim exemption (any row count)
    return cap                         # multiple of the packing factor


def _lane_dense_cols(total):
    """Largest L (multiple of 128, <= _MAX_COL_TILE) dividing `total`, or None."""
    k_max = min(_MAX_COL_TILE, total) // 128
    for k in range(k_max, 0, -1):
        L = 128 * k
        if total % L == 0:
            return L
    return None


def _act_kernel(x_ref, o_ref, *, relu_type: str, gelu_tanh_approx: bool):
    """Elementwise activation on one (br, bc) tile (no alpha operand)."""
    if relu_type == "relu":
        x = x_ref[...]                                  # native dtype
        o_ref[...] = jnp.maximum(x, 0.0).astype(o_ref.dtype)
    elif relu_type == "leakyrelu":
        x = x_ref[...]                                  # native dtype
        o_ref[...] = jnp.where(x >= 0, x, x * _LEAKY_SLOPE).astype(o_ref.dtype)
    elif relu_type == "silu":
        x = x_ref[...].astype(jnp.float32)
        # exp runs on the EUP slot; exact reciprocal keeps bit-closeness to PyTorch.
        y = x * pl.reciprocal(1.0 + jnp.exp(-x))
        o_ref[...] = y.astype(o_ref.dtype)
    elif relu_type == "gelu":
        x = x_ref[...].astype(jnp.float32)
        if gelu_tanh_approx:
            # tanh-approx variant: transcendental on the EUP slot (v7x VALU relief).
            c0 = math.sqrt(2.0 / math.pi)
            y = 0.5 * x * (1.0 + jnp.tanh(c0 * (x + 0.044715 * x * x * x)))
        else:
            # PyTorch nn.GELU() default: exact erf formulation.
            y = 0.5 * x * (1.0 + jax.lax.erf(x * (1.0 / math.sqrt(2.0))))
        o_ref[...] = y.astype(o_ref.dtype)
    else:
        raise AssertionError(f"activation type {relu_type} not support.")


def _prelu_kernel(x_ref, alpha_ref, o_ref):
    """PReLU on one (br, bc) tile with a per-row (br, 1) slope column (native dtype)."""
    x = x_ref[...]
    a = alpha_ref[...]                                  # (br, 1) -> broadcast over lanes
    o_ref[...] = jnp.where(x >= 0, x, a * x).astype(o_ref.dtype)


def act_layer(x, channels, relu_type="leakyrelu", prelu_weight=None,
              gelu_tanh_approx=False):
    """ActLayer forward. x: (N, C, H, W), NCHW like PyTorch."""
    relu_type = relu_type.lower()
    if relu_type not in ("relu", "leakyrelu", "prelu", "silu", "gelu", "none"):
        raise AssertionError(f"activation type {relu_type} not support.")

    n, c, h, w = x.shape
    assert c == channels

    if relu_type == "none":
        # Direct pass: skip the HBM read+write round trip entirely.
        return x

    itemsize = jnp.dtype(x.dtype).itemsize
    elems = n * c * h * w

    if relu_type == "prelu":
        # Per-channel slope: rows must stay (batch, channel) pairs.
        rows, cols = n * c, h * w
    else:
        # Channel structure is irrelevant: pick the most lane-dense 2D view so
        # every store is an unmasked full-width vst and DMA rows stay contiguous.
        L = _lane_dense_cols(elems)
        if L is not None:
            rows, cols = elems // L, L
        else:
            rows, cols = n * c, h * w
    x2d = x.reshape(rows, cols)        # free: contiguous NCHW re-view

    bc = _col_tile(cols)
    br = _row_tile(rows, bc, x.dtype)
    grid = (pl.cdiv(rows, br), pl.cdiv(cols, bc))

    flops_per = {"relu": 1, "leakyrelu": 2, "prelu": 2, "silu": 4, "gelu": 6}[relu_type]
    trans_per = 1 if relu_type in ("silu", "gelu") else 0
    cost = pl.CostEstimate(
        flops=flops_per * elems,
        transcendentals=trans_per * elems,
        bytes_accessed=2 * elems * itemsize,
    )
    compiler_params = pltpu.CompilerParams(
        dimension_semantics=("parallel", "parallel"),
        vmem_limit_bytes=_VMEM_LIMIT_BYTES,
    )
    x_spec = pl.BlockSpec((br, bc), lambda i, j: (i, j))
    out_spec = pl.BlockSpec((br, bc), lambda i, j: (i, j))

    if relu_type == "prelu":
        assert prelu_weight is not None
        pw = jnp.asarray(prelu_weight, dtype=x.dtype).reshape(-1)
        if pw.shape[0] == 1:           # torch.nn.PReLU() shared-parameter default
            pw = jnp.broadcast_to(pw, (channels,))
        assert pw.shape == (channels,)
        alpha_rows = jnp.broadcast_to(pw[None, :], (n, c)).reshape(rows, 1)
        out2d = pl.pallas_call(
            _prelu_kernel,
            out_shape=jax.ShapeDtypeStruct((rows, cols), x.dtype),
            grid_spec=pltpu.PrefetchScalarGridSpec(
                num_scalar_prefetch=0,
                grid=grid,
                in_specs=[
                    x_spec,
                    # block index independent of inner axis j -> fetched once per row band
                    pl.BlockSpec((br, 1), lambda i, j: (i, 0)),
                ],
                out_specs=out_spec,
            ),
            compiler_params=compiler_params,
            cost_estimate=cost,
        )(x2d, alpha_rows)
    else:
        kernel = functools.partial(_act_kernel, relu_type=relu_type,
                                   gelu_tanh_approx=gelu_tanh_approx)
        out2d = pl.pallas_call(
            kernel,
            out_shape=jax.ShapeDtypeStruct((rows, cols), x.dtype),
            grid_spec=pltpu.PrefetchScalarGridSpec(
                num_scalar_prefetch=0,
                grid=grid,
                in_specs=[x_spec],
                out_specs=out_spec,
            ),
            compiler_params=compiler_params,
            cost_estimate=cost,
        )(x2d)

    return out2d.reshape(n, c, h, w)


def _ref_act(x, relu_type, prelu_weight=None):
    relu_type = relu_type.lower()
    if relu_type == "relu":
        return jnp.maximum(x, 0.0)
    if relu_type == "leakyrelu":
        return jnp.where(x >= 0, x, x * jnp.asarray(0.2, x.dtype))
    if relu_type == "prelu":
        a = jnp.asarray(prelu_weight, x.dtype)[None, :, None, None]
        return jnp.where(x >= 0, x, a * x)
    if relu_type == "silu":
        return (x.astype(jnp.float32) * jax.nn.sigmoid(x.astype(jnp.float32))).astype(x.dtype)
    if relu_type == "gelu":
        xf = x.astype(jnp.float32)
        return (0.5 * xf * (1.0 + jax.lax.erf(xf / jnp.sqrt(2.0)))).astype(x.dtype)
    return x * 1.0


if __name__ == "__main__":
    key = jax.random.PRNGKey(0)
    ok = True
    # Primary small shape (single tile) + a shape exercising the non-128 /
    # odd-spatial fallback view with full-dim (exempt) block shapes.
    shapes = [(2, 4, 16, 16), (3, 5, 17, 23)]
    for (N, C, H, W) in shapes:
        key, k1 = jax.random.split(key)
        x = jax.random.normal(k1, (N, C, H, W), dtype=jnp.float32)
        prelu_w = jnp.full((C,), 0.25, jnp.float32)  # nn.PReLU per-channel init
        for relu_type in ["leakyrelu", "relu", "prelu", "silu", "gelu", "none"]:
            out = act_layer(x, C, relu_type, prelu_weight=prelu_w)
            out = jax.block_until_ready(out)
            ref = _ref_act(x, relu_type, prelu_weight=prelu_w)
            tol = 1e-5
            if not np.allclose(np.asarray(out), np.asarray(ref), atol=tol, rtol=tol):
                ok = False
                print(f"MISMATCH shape={(N, C, H, W)} type={relu_type}")

    # bf16 exercises the native-dtype (no-upcast) path for relu/leakyrelu/prelu.
    key, k2 = jax.random.split(key)
    xb = jax.random.normal(k2, (2, 4, 16, 16), dtype=jnp.bfloat16)
    prelu_wb = jnp.full((4,), 0.25, jnp.bfloat16)
    for relu_type in ["leakyrelu", "relu", "prelu"]:
        out = jax.block_until_ready(act_layer(xb, 4, relu_type, prelu_weight=prelu_wb))
        ref = _ref_act(xb, relu_type, prelu_weight=prelu_wb)
        if not np.allclose(np.asarray(out, np.float32), np.asarray(ref, np.float32),
                           atol=1e-2, rtol=1e-2):
            ok = False
            print(f"MISMATCH bf16 type={relu_type}")

    if ok:
        print("KERNEL_OK")
</pallas_src>

<mosaic_0001>
module attributes {stable_mosaic.version = 11 : i64} {
  func.func @_act_kernel(%arg0: i32, %arg1: i32, %arg2: memref<1x2048xf32, #tpu.memory_space<vmem>>, %arg3: memref<1x2048xf32, #tpu.memory_space<vmem>>) attributes {dimension_semantics = [#tpu.dimension_semantics<parallel>, #tpu.dimension_semantics<parallel>], iteration_bounds = array<i64: 1, 1>, scalar_prefetch = 0 : i64, scratch_operands = 0 : i64, tpu.core_type = #tpu.core_type<tc>, window_params = [{transform_indices = @transform_0, window_bounds = array<i64: 1, 2048>}, {transform_indices = @transform_1, window_bounds = array<i64: 1, 2048>}]} {
    %c0 = arith.constant 0 : index
    %c0_0 = arith.constant 0 : index
    %0 = vector.load %arg2[%c0, %c0_0] : memref<1x2048xf32, #tpu.memory_space<vmem>>, vector<1x2048xf32>
    %cst = arith.constant 0.000000e+00 : f32
    %1 = vector.broadcast %cst : f32 to vector<1x2048xf32>
    %2 = arith.cmpf oge, %0, %1 : vector<1x2048xf32>
    %cst_1 = arith.constant 2.000000e-01 : f32
    %3 = vector.broadcast %cst_1 : f32 to vector<1x2048xf32>
    %4 = arith.mulf %0, %3 : vector<1x2048xf32>
    %5 = arith.select %2, %0, %4 : vector<1x2048xi1>, vector<1x2048xf32>
    %c0_2 = arith.constant 0 : index
    %c0_3 = arith.constant 0 : index
    %6 = vector.load %arg3[%c0_2, %c0_3] : memref<1x2048xf32, #tpu.memory_space<vmem>>, vector<1x2048xf32>
    tpu.vector_store %arg3[%c0_2, %c0_3], %5 {strides = array<i32>} : memref<1x2048xf32, #tpu.memory_space<vmem>>, vector<1x2048xf32>,
    return
  }
  func.func @transform_0(%arg0: i32, %arg1: i32) -> (i32, i32) {
    %c0_i32 = arith.constant 0 : i32
    return %arg0, %arg1 : i32, i32
  }
  func.func @transform_1(%arg0: i32, %arg1: i32) -> (i32, i32) {
    %c0_i32 = arith.constant 0 : i32
    return %arg0, %arg1 : i32, i32
  }
}

</mosaic_0001>

<llo_original>
// kernel: tpu_custom_call.1
$region0: #{tpu_custom_call.1}
  #allocation0 [shape = 'u32[]', space=smem, size = 0x4, offset = 0x4, fixed_abs, tag = 'smem constant byte address 0x4 - core index']
  #allocation1 [shape = 'u32[144,128]{1,0:T(1,128)}', space=vmem, size = 0x12000, scoped, tag = 'internal scratch']
  %s0 = inlined_call_operand.hbm [shape: f32[1,2048], index: 0, kind: input, shape index: {}]
  %s1 = inlined_call_operand.hbm [shape: f32[1,2048], index: 1, kind: output, shape index: {}]
  %s2 = sld [smem:[#allocation0]]
  $region18: #{tpu_custom_call.1} parent=0
    _
  %s4 = ssub.s32 1, %s2
  %s5 = scalar_select 0, %s4, %s2
  $region1: #{tpu_custom_call.1} parent=0
    #allocation2 [shape = 'u8[8192]{0}', space=vmem, size = 0x2000, scoped, tag = 'input window, operand 0, single buffered']
    #allocation3 [shape = 's32[1]{0}', space=sflag, size = 0x4, scoped, tag = 'scoped memory for tpu_custom_call.1']
    #allocation4 [shape = 's32[1]{0}', space=sflag, size = 0x4, scoped, tag = 'scoped memory for tpu_custom_call.1']
    #allocation5 [shape = 'u8[8192]{0}', space=vmem, size = 0x2000, scoped, tag = 'output window, operand 0, single buffered']
    %6 = vsyncpa [#allocation3], 0
    %7 = vsyncpa [#allocation4], 0
    // Predicated region
    $region2: #{tpu_custom_call.1} parent=1 // pred_check
      _
    $region3: #{tpu_custom_call.1} parent=1 // pred_check_branch
      %9 = sbr.rel (0) target = $region5
    $region4: #{tpu_custom_call.1} parent=1 // pred_region
      %s11 = ssub.s32 256, 256
      %12 = vsyncadd [#allocation3], %s11
      %s14 = sshll.u32 [#allocation2], 4
      %s15 = int_to_ptr.vmem [resolvable:$true] %s14
      %17 = dma.hbm_to_vmem [thread:$0]  %s0, 256, %s15, [#allocation3]
    $region5: #{tpu_custom_call.1} parent=1 // pred_fallthru
      _
    // Predicated region
    $region6: #{tpu_custom_call.1} parent=1 // pred_check
      _
    $region7: #{tpu_custom_call.1} parent=1 // pred_check_branch
      %19 = sbr.rel (0) target = $region9
    $region8: #{tpu_custom_call.1} parent=1 // pred_region
      %20 = dma.done [#allocation3], 256
    $region9: #{tpu_custom_call.1} parent=1 // pred_fallthru
      _
    %v21 = vld [vmem:[#allocation2] sm:$0xff]
    %v22 = vld [vmem:[#allocation2 + $0x8] sm:$0xff]
    %vm23 = vcmp.ge.f32.partialorder %v21, 0.0
    %vm24 = vcmp.ge.f32.partialorder %v22, 0.0
    %v25 = vmul.f32 %v21, 0.2
    %v26 = vmul.f32 %v22, 0.2
    %v27 = vsel %vm23, %v21, %v25
    %v28 = vsel %vm24, %v22, %v26
    %29 = vst [vmem:[#allocation5] sm:$0xff] %v27
    %30 = vst [vmem:[#allocation5 + $0x8] sm:$0xff] %v28
    // Predicated region
    $region10: #{tpu_custom_call.1} parent=1 // pred_check
      _
    $region11: #{tpu_custom_call.1} parent=1 // pred_check_branch
      %32 = sbr.rel (0) target = $region13
    $region12: #{tpu_custom_call.1} parent=1 // pred_region
      %s34 = ssub.s32 256, 256
      %35 = vsyncadd [#allocation4], %s34
      %s37 = sshll.u32 [#allocation5], 4
      %s38 = int_to_ptr.vmem [resolvable:$true] %s37
      %40 = dma.vmem_to_hbm [thread:$0]  %s38, 256, %s1, [#allocation4]
    $region13: #{tpu_custom_call.1} parent=1 // pred_fallthru
      _
    // Predicated region
    $region14: #{tpu_custom_call.1} parent=1 // pred_check
      _
    $region15: #{tpu_custom_call.1} parent=1 // pred_check_branch
      %42 = sbr.rel (0) target = $region17
    $region16: #{tpu_custom_call.1} parent=1 // pred_region
      %43 = dma.done [#allocation4], 256
    $region17: #{tpu_custom_call.1} parent=1 // pred_fallthru
      _
    %44 = vsyncpa [#allocation3], 1
    %45 = vsyncpa [#allocation4], 1

</llo_original>
